<compile_context>
chip_gen: v7x
topology: tpu7x:2x2x1
jax: 0.10.0
libtpu: 0.0.40
codegen_flags: <defaults>
</compile_context>

<pallas_src>
import functools
import math

import jax
import jax.numpy as jnp
from jax.experimental import pallas as pl
from jax.experimental.pallas import tpu as pltpu


def _mha_head_kernel(x_ref, wq_ref, wk_ref, wv_ref, wo_ref,
                     bq_ref, bk_ref, bv_ref, bo_ref,
                     o_ref, acc_ref, *, head_dim: int):
    """One (batch, head) grid step of multi-head self-attention.

    x_ref        : (1, S, E) input block for batch b
    w{q,k,v}_ref : (1, E, d) per-head projection weights
    wo_ref       : (1, d, E) per-head slice of the output projection
    b{q,k,v}_ref : (1, 1, d) per-head biases ; bo_ref : (1, E)
    o_ref        : (1, S, E) output block (written on the last head)
    acc_ref      : (S, E) f32 VMEM accumulator across heads
    """
    h = pl.program_id(1)
    dt = x_ref.dtype                     # native MXU input dtype (bf16 stays bf16)

    x = x_ref[0]                         # (S, E)

    # Per-head projections: rank-2 MXU matmuls, f32 accumulation, bias add in f32.
    q = jnp.dot(x, wq_ref[0], preferred_element_type=jnp.float32) + bq_ref[0]
    k = jnp.dot(x, wk_ref[0], preferred_element_type=jnp.float32) + bk_ref[0]
    v = jnp.dot(x, wv_ref[0], preferred_element_type=jnp.float32) + bv_ref[0]

    # Scaled dot-product scores; contract the shared head dim via
    # dimension_numbers instead of materializing K^T.
    scale = 1.0 / math.sqrt(head_dim)
    s = jax.lax.dot_general((q * scale).astype(dt), k.astype(dt),
                            (((1,), (1,)), ((), ())),
                            preferred_element_type=jnp.float32)      # (S, S)

    # Softmax in f32; reciprocal on the otherwise-idle EUP slot.
    m = jnp.max(s, axis=-1, keepdims=True)
    p = jnp.exp(s - m)
    p = p * pl.reciprocal(jnp.sum(p, axis=-1, keepdims=True), approx=True)

    ctx = jnp.dot(p.astype(dt), v.astype(dt),
                  preferred_element_type=jnp.float32)                # (S, d)

    # This head's contribution to the output projection, accumulated in f32
    # VMEM -> a single lane-dense (S, E) slab, no per-head concatenate.
    part = jnp.dot(ctx.astype(dt), wo_ref[0],
                   preferred_element_type=jnp.float32)               # (S, E)

    @pl.when(h == 0)
    def _init():
        acc_ref[...] = jnp.zeros_like(acc_ref)

    acc_ref[...] += part

    @pl.when(h == pl.num_programs(1) - 1)
    def _store():
        o_ref[0] = (acc_ref[...] + bo_ref[...]).astype(o_ref.dtype)


def multihead_forward(x, params, *, num_heads: int):
    """MultiHead.forward(x) == mha(x, x, x)[0]   (attention output only)."""
    B, S, E = x.shape
    assert E % num_heads == 0
    H = num_heads
    d = E // H

    # Pre-split the projection weights per head OUTSIDE the kernel (one-time,
    # XLA-level reshape/transpose). BlockSpec then streams lane-dense
    # (E, d) / (d, E) per-head blocks, so the kernel never slices the lane dim.
    wq_h = params["wq"].reshape(E, H, d).transpose(1, 0, 2)   # (H, E, d)
    wk_h = params["wk"].reshape(E, H, d).transpose(1, 0, 2)
    wv_h = params["wv"].reshape(E, H, d).transpose(1, 0, 2)
    wo_h = params["wo"].reshape(H, d, E)                      # (H, d, E)
    bq_h = params["bq"].reshape(H, 1, d)                      # (H, 1, d)
    bk_h = params["bk"].reshape(H, 1, d)
    bv_h = params["bv"].reshape(H, 1, d)
    bo = params["bo"]                                         # (1, E)

    kernel = functools.partial(_mha_head_kernel, head_dim=d)

    x_spec = pl.BlockSpec((1, S, E), lambda b, h: (b, 0, 0))
    w_spec = pl.BlockSpec((1, E, d), lambda b, h: (h, 0, 0))
    wo_spec = pl.BlockSpec((1, d, E), lambda b, h: (h, 0, 0))
    bias_spec = pl.BlockSpec((1, 1, d), lambda b, h: (h, 0, 0))
    bo_spec = pl.BlockSpec((1, E), lambda b, h: (0, 0))

    # TODO(synk): for long sequences, add a query-tile grid axis and stream K/V
    # tiles with online softmax (flash-style) instead of holding the full
    # (S, E) block and (S, S) scores per step.
    # NOTE: E=32 in this module is lane-sparse (<128 lanes); padding E to 128 in
    # the wrapper would give unmasked vector stores but is unnecessary here.
    return pl.pallas_call(
        kernel,
        out_shape=jax.ShapeDtypeStruct((B, S, E), x.dtype),
        grid_spec=pltpu.PrefetchScalarGridSpec(
            num_scalar_prefetch=0,
            grid=(B, H),                       # heads = reduction axis (last)
            in_specs=[
                x_spec,
                w_spec, w_spec, w_spec, wo_spec,
                bias_spec, bias_spec, bias_spec, bo_spec,
            ],
            out_specs=pl.BlockSpec((1, S, E), lambda b, h: (b, 0, 0)),
            scratch_shapes=[pltpu.VMEM((S, E), jnp.float32)],
        ),
        compiler_params=pltpu.CompilerParams(
            dimension_semantics=("parallel", "arbitrary"),
            vmem_limit_bytes=64 * 1024 * 1024,
        ),
    )(x, wq_h, wk_h, wv_h, wo_h, bq_h, bk_h, bv_h, bo)


def _reference_mha(x, params, *, num_heads: int):
    """Plain-JAX reference for correctness checking."""
    B, S, E = x.shape
    d = E // num_heads
    q = x @ params["wq"] + params["bq"]
    k = x @ params["wk"] + params["bk"]
    v = x @ params["wv"] + params["bv"]

    def split(t):  # (B, S, E) -> (B, H, S, d)
        return t.reshape(B, S, num_heads, d).transpose(0, 2, 1, 3)

    qh, kh, vh = split(q), split(k), split(v)
    s = jnp.einsum("bhqd,bhkd->bhqk", qh, kh) / math.sqrt(d)
    p = jax.nn.softmax(s, axis=-1)
    ctx = jnp.einsum("bhqk,bhkd->bhqd", p, vh)
    ctx = ctx.transpose(0, 2, 1, 3).reshape(B, S, E)
    return ctx @ params["wo"] + params["bo"]


def init_params(key, embed_dim):
    """Deterministic synthetic parameters (shapes mirror nn.MultiheadAttention)."""
    ks = jax.random.split(key, 8)
    lim = 1.0 / math.sqrt(embed_dim)

    def w(k):
        return jax.random.uniform(k, (embed_dim, embed_dim), jnp.float32, -lim, lim)

    def b(k):
        return jax.random.uniform(k, (1, embed_dim), jnp.float32, -lim, lim)

    return {
        "wq": w(ks[0]), "wk": w(ks[1]), "wv": w(ks[2]), "wo": w(ks[3]),
        "bq": b(ks[4]), "bk": b(ks[5]), "bv": b(ks[6]), "bo": b(ks[7]),
    }


if __name__ == "__main__":
    B, S, E, H = 2, 8, 32, 4   # small shapes consistent with the module

    key = jax.random.PRNGKey(0)
    k_x, k_p = jax.random.split(key)
    x = jax.random.normal(k_x, (B, S, E), jnp.float32)
    params = init_params(k_p, E)

    out = multihead_forward(x, params, num_heads=H)
    out = jax.block_until_ready(out)

    ref = _reference_mha(x, params, num_heads=H)
    assert out.shape == (B, S, E)
    # approx-reciprocal softmax => slightly looser tolerance than exact divide.
    assert jnp.allclose(out, ref, atol=1e-2, rtol=1e-2), "mismatch vs reference"

    print("KERNEL_OK")
</pallas_src>

<mosaic_0001>
module attributes {stable_mosaic.version = 11 : i64} {
  func.func @_mha_head_kernel(%arg0: i32, %arg1: i32, %arg2: memref<1x8x32xf32, #tpu.memory_space<vmem>>, %arg3: memref<1x32x8xf32, #tpu.memory_space<vmem>>, %arg4: memref<1x32x8xf32, #tpu.memory_space<vmem>>, %arg5: memref<1x32x8xf32, #tpu.memory_space<vmem>>, %arg6: memref<1x8x32xf32, #tpu.memory_space<vmem>>, %arg7: memref<1x1x8xf32, #tpu.memory_space<vmem>>, %arg8: memref<1x1x8xf32, #tpu.memory_space<vmem>>, %arg9: memref<1x1x8xf32, #tpu.memory_space<vmem>>, %arg10: memref<1x32xf32, #tpu.memory_space<vmem>>, %arg11: memref<1x8x32xf32, #tpu.memory_space<vmem>>, %arg12: memref<8x32xf32, #tpu.memory_space<vmem>>) attributes {dimension_semantics = [#tpu.dimension_semantics<parallel>, #tpu.dimension_semantics<arbitrary>], iteration_bounds = array<i64: 2, 4>, scalar_prefetch = 0 : i64, scratch_operands = 1 : i64, tpu.core_type = #tpu.core_type<tc>, window_params = [{transform_indices = @transform_0, window_bounds = array<i64: 1, 8, 32>}, {transform_indices = @transform_1, window_bounds = array<i64: 1, 32, 8>}, {transform_indices = @transform_2, window_bounds = array<i64: 1, 32, 8>}, {transform_indices = @transform_3, window_bounds = array<i64: 1, 32, 8>}, {transform_indices = @transform_4, window_bounds = array<i64: 1, 8, 32>}, {transform_indices = @transform_5, window_bounds = array<i64: 1, 1, 8>}, {transform_indices = @transform_6, window_bounds = array<i64: 1, 1, 8>}, {transform_indices = @transform_7, window_bounds = array<i64: 1, 1, 8>}, {pipeline_mode = #tpu.pipeline_mode<synchronous>, transform_indices = @transform_8, window_bounds = array<i64: 1, 32>}, {transform_indices = @transform_9, window_bounds = array<i64: 1, 8, 32>}]} {
    %c0 = arith.constant 0 : index
    %c0_0 = arith.constant 0 : index
    %c0_1 = arith.constant 0 : index
    %0 = vector.load %arg2[%c0, %c0_0, %c0_1] : memref<1x8x32xf32, #tpu.memory_space<vmem>>, vector<1x8x32xf32>
    %1 = vector.shape_cast %0 : vector<1x8x32xf32> to vector<8x32xf32>
    %c0_2 = arith.constant 0 : index
    %c0_3 = arith.constant 0 : index
    %c0_4 = arith.constant 0 : index
    %2 = vector.load %arg3[%c0_2, %c0_3, %c0_4] : memref<1x32x8xf32, #tpu.memory_space<vmem>>, vector<1x32x8xf32>
    %3 = vector.shape_cast %2 : vector<1x32x8xf32> to vector<32x8xf32>
    %cst = arith.constant dense<0.000000e+00> : vector<8x8xf32>
    %4 = tpu.matmul %1, %3, %cst {dimension_numbers = #tpu.dot_dimension_numbers<[1], [0], [0], [1], [0, 0, 1, 1], [], []>} : vector<8x32xf32>, vector<32x8xf32>, vector<8x8xf32> -> vector<8x8xf32>
    %c0_5 = arith.constant 0 : index
    %c0_6 = arith.constant 0 : index
    %c0_7 = arith.constant 0 : index
    %5 = vector.load %arg7[%c0_5, %c0_6, %c0_7] : memref<1x1x8xf32, #tpu.memory_space<vmem>>, vector<1x1x8xf32>
    %6 = vector.shape_cast %5 : vector<1x1x8xf32> to vector<1x8xf32>
    %7 = vector.broadcast %6 : vector<1x8xf32> to vector<8x8xf32>
    %8 = arith.addf %4, %7 : vector<8x8xf32>
    %c0_8 = arith.constant 0 : index
    %c0_9 = arith.constant 0 : index
    %c0_10 = arith.constant 0 : index
    %9 = vector.load %arg4[%c0_8, %c0_9, %c0_10] : memref<1x32x8xf32, #tpu.memory_space<vmem>>, vector<1x32x8xf32>
    %10 = vector.shape_cast %9 : vector<1x32x8xf32> to vector<32x8xf32>
    %cst_11 = arith.constant dense<0.000000e+00> : vector<8x8xf32>
    %11 = tpu.matmul %1, %10, %cst_11 {dimension_numbers = #tpu.dot_dimension_numbers<[1], [0], [0], [1], [0, 0, 1, 1], [], []>} : vector<8x32xf32>, vector<32x8xf32>, vector<8x8xf32> -> vector<8x8xf32>
    %c0_12 = arith.constant 0 : index
    %c0_13 = arith.constant 0 : index
    %c0_14 = arith.constant 0 : index
    %12 = vector.load %arg8[%c0_12, %c0_13, %c0_14] : memref<1x1x8xf32, #tpu.memory_space<vmem>>, vector<1x1x8xf32>
    %13 = vector.shape_cast %12 : vector<1x1x8xf32> to vector<1x8xf32>
    %14 = vector.broadcast %13 : vector<1x8xf32> to vector<8x8xf32>
    %15 = arith.addf %11, %14 : vector<8x8xf32>
    %c0_15 = arith.constant 0 : index
    %c0_16 = arith.constant 0 : index
    %c0_17 = arith.constant 0 : index
    %16 = vector.load %arg5[%c0_15, %c0_16, %c0_17] : memref<1x32x8xf32, #tpu.memory_space<vmem>>, vector<1x32x8xf32>
    %17 = vector.shape_cast %16 : vector<1x32x8xf32> to vector<32x8xf32>
    %cst_18 = arith.constant dense<0.000000e+00> : vector<8x8xf32>
    %18 = tpu.matmul %1, %17, %cst_18 {dimension_numbers = #tpu.dot_dimension_numbers<[1], [0], [0], [1], [0, 0, 1, 1], [], []>} : vector<8x32xf32>, vector<32x8xf32>, vector<8x8xf32> -> vector<8x8xf32>
    %c0_19 = arith.constant 0 : index
    %c0_20 = arith.constant 0 : index
    %c0_21 = arith.constant 0 : index
    %19 = vector.load %arg9[%c0_19, %c0_20, %c0_21] : memref<1x1x8xf32, #tpu.memory_space<vmem>>, vector<1x1x8xf32>
    %20 = vector.shape_cast %19 : vector<1x1x8xf32> to vector<1x8xf32>
    %21 = vector.broadcast %20 : vector<1x8xf32> to vector<8x8xf32>
    %22 = arith.addf %18, %21 : vector<8x8xf32>
    %cst_22 = arith.constant 0.353553385 : f32
    %23 = vector.broadcast %cst_22 : f32 to vector<8x8xf32>
    %24 = arith.mulf %8, %23 : vector<8x8xf32>
    %cst_23 = arith.constant dense<0.000000e+00> : vector<8x8xf32>
    %25 = tpu.matmul %24, %15, %cst_23 {dimension_numbers = #tpu.dot_dimension_numbers<[1], [1], [0], [0], [0, 0, 1, 0], [], []>} : vector<8x8xf32>, vector<8x8xf32>, vector<8x8xf32> -> vector<8x8xf32>
    %cst_24 = arith.constant dense<0xFF800000> : vector<8xf32>
    %26 = vector.multi_reduction <maximumf>, %25, %cst_24 [1] : vector<8x8xf32> to vector<8xf32>
    %27 = vector.shape_cast %26 : vector<8xf32> to vector<8x1xf32>
    %28 = vector.broadcast %27 : vector<8x1xf32> to vector<8x8xf32>
    %29 = arith.subf %25, %28 : vector<8x8xf32>
    %30 = math.exp %29 : vector<8x8xf32>
    %cst_25 = arith.constant dense<0.000000e+00> : vector<8xf32>
    %31 = vector.multi_reduction <add>, %30, %cst_25 [1] : vector<8x8xf32> to vector<8xf32>
    %32 = vector.shape_cast %31 : vector<8xf32> to vector<8x1xf32>
    %33 = tpu.reciprocal %32 {approx = true} : vector<8x1xf32> -> vector<8x1xf32>
    %34 = vector.broadcast %33 : vector<8x1xf32> to vector<8x8xf32>
    %35 = arith.mulf %30, %34 : vector<8x8xf32>
    %cst_26 = arith.constant dense<0.000000e+00> : vector<8x8xf32>
    %36 = tpu.matmul %35, %22, %cst_26 {dimension_numbers = #tpu.dot_dimension_numbers<[1], [0], [0], [1], [0, 0, 1, 1], [], []>} : vector<8x8xf32>, vector<8x8xf32>, vector<8x8xf32> -> vector<8x8xf32>
    %c0_27 = arith.constant 0 : index
    %c0_28 = arith.constant 0 : index
    %c0_29 = arith.constant 0 : index
    %37 = vector.load %arg6[%c0_27, %c0_28, %c0_29] : memref<1x8x32xf32, #tpu.memory_space<vmem>>, vector<1x8x32xf32>
    %38 = vector.shape_cast %37 : vector<1x8x32xf32> to vector<8x32xf32>
    %cst_30 = arith.constant dense<0.000000e+00> : vector<8x32xf32>
    %39 = tpu.matmul %36, %38, %cst_30 {dimension_numbers = #tpu.dot_dimension_numbers<[1], [0], [0], [1], [0, 0, 1, 1], [], []>} : vector<8x8xf32>, vector<8x32xf32>, vector<8x32xf32> -> vector<8x32xf32>
    %c0_i32 = arith.constant 0 : i32
    %40 = arith.cmpi eq, %arg1, %c0_i32 : i32
    %41 = arith.extui %40 : i1 to i32
    %c0_i32_31 = arith.constant 0 : i32
    %42 = arith.cmpi ne, %41, %c0_i32_31 : i32
    scf.if %42 {
      %cst_37 = arith.constant 0.000000e+00 : f32
      %49 = vector.broadcast %cst_37 : f32 to vector<8x32xf32>
      %c0_38 = arith.constant 0 : index
      %c0_39 = arith.constant 0 : index
      %50 = vector.load %arg12[%c0_38, %c0_39] : memref<8x32xf32, #tpu.memory_space<vmem>>, vector<8x32xf32>
      tpu.vector_store %arg12[%c0_38, %c0_39], %49 {strides = array<i32>} : memref<8x32xf32, #tpu.memory_space<vmem>>, vector<8x32xf32>,
    } else {
    }
    %c0_32 = arith.constant 0 : index
    %c0_33 = arith.constant 0 : index
    %43 = vector.load %arg12[%c0_32, %c0_33] : memref<8x32xf32, #tpu.memory_space<vmem>>, vector<8x32xf32>
    %44 = arith.addf %43, %39 : vector<8x32xf32>
    %c0_34 = arith.constant 0 : index
    %c0_35 = arith.constant 0 : index
    %45 = vector.load %arg12[%c0_34, %c0_35] : memref<8x32xf32, #tpu.memory_space<vmem>>, vector<8x32xf32>
    tpu.vector_store %arg12[%c0_34, %c0_35], %44 {strides = array<i32>} : memref<8x32xf32, #tpu.memory_space<vmem>>, vector<8x32xf32>,
    %c3_i32 = arith.constant 3 : i32
    %46 = arith.cmpi eq, %arg1, %c3_i32 : i32
    %47 = arith.extui %46 : i1 to i32
    %c0_i32_36 = arith.constant 0 : i32
    %48 = arith.cmpi ne, %47, %c0_i32_36 : i32
    scf.if %48 {
      %c0_37 = arith.constant 0 : index
      %c0_38 = arith.constant 0 : index
      %49 = vector.load %arg12[%c0_37, %c0_38] : memref<8x32xf32, #tpu.memory_space<vmem>>, vector<8x32xf32>
      %c0_39 = arith.constant 0 : index
      %c0_40 = arith.constant 0 : index
      %50 = vector.load %arg10[%c0_39, %c0_40] : memref<1x32xf32, #tpu.memory_space<vmem>>, vector<1x32xf32>
      %51 = vector.broadcast %50 : vector<1x32xf32> to vector<8x32xf32>
      %52 = arith.addf %49, %51 : vector<8x32xf32>
      %c0_41 = arith.constant 0 : index
      %c0_42 = arith.constant 0 : index
      %c0_43 = arith.constant 0 : index
      %53 = vector.load %arg11[%c0_41, %c0_42, %c0_43] : memref<1x8x32xf32, #tpu.memory_space<vmem>>, vector<1x8x32xf32>
      %54 = vector.shape_cast %53 : vector<1x8x32xf32> to vector<8x32xf32>
      %55 = vector.shape_cast %52 : vector<8x32xf32> to vector<1x8x32xf32>
      tpu.vector_store %arg11[%c0_41, %c0_42, %c0_43], %55 {strides = array<i32>} : memref<1x8x32xf32, #tpu.memory_space<vmem>>, vector<1x8x32xf32>,
    } else {
    }
    return
  }
  func.func @transform_0(%arg0: i32, %arg1: i32) -> (i32, i32, i32) {
    %c0_i32 = arith.constant 0 : i32
    %c0_i32_0 = arith.constant 0 : i32
    %c0_i32_1 = arith.constant 0 : i32
    return %arg0, %c0_i32, %c0_i32_0 : i32, i32, i32
  }
  func.func @transform_1(%arg0: i32, %arg1: i32) -> (i32, i32, i32) {
    %c0_i32 = arith.constant 0 : i32
    %c0_i32_0 = arith.constant 0 : i32
    %c0_i32_1 = arith.constant 0 : i32
    return %arg1, %c0_i32, %c0_i32_0 : i32, i32, i32
  }
  func.func @transform_2(%arg0: i32, %arg1: i32) -> (i32, i32, i32) {
    %c0_i32 = arith.constant 0 : i32
    %c0_i32_0 = arith.constant 0 : i32
    %c0_i32_1 = arith.constant 0 : i32
    return %arg1, %c0_i32, %c0_i32_0 : i32, i32, i32
  }
  func.func @transform_3(%arg0: i32, %arg1: i32) -> (i32, i32, i32) {
    %c0_i32 = arith.constant 0 : i32
    %c0_i32_0 = arith.constant 0 : i32
    %c0_i32_1 = arith.constant 0 : i32
    return %arg1, %c0_i32, %c0_i32_0 : i32, i32, i32
  }
  func.func @transform_4(%arg0: i32, %arg1: i32) -> (i32, i32, i32) {
    %c0_i32 = arith.constant 0 : i32
    %c0_i32_0 = arith.constant 0 : i32
    %c0_i32_1 = arith.constant 0 : i32
    return %arg1, %c0_i32, %c0_i32_0 : i32, i32, i32
  }
  func.func @transform_5(%arg0: i32, %arg1: i32) -> (i32, i32, i32) {
    %c0_i32 = arith.constant 0 : i32
    %c0_i32_0 = arith.constant 0 : i32
    %c0_i32_1 = arith.constant 0 : i32
    return %arg1, %c0_i32, %c0_i32_0 : i32, i32, i32
  }
  func.func @transform_6(%arg0: i32, %arg1: i32) -> (i32, i32, i32) {
    %c0_i32 = arith.constant 0 : i32
    %c0_i32_0 = arith.constant 0 : i32
    %c0_i32_1 = arith.constant 0 : i32
    return %arg1, %c0_i32, %c0_i32_0 : i32, i32, i32
  }
  func.func @transform_7(%arg0: i32, %arg1: i32) -> (i32, i32, i32) {
    %c0_i32 = arith.constant 0 : i32
    %c0_i32_0 = arith.constant 0 : i32
    %c0_i32_1 = arith.constant 0 : i32
    return %arg1, %c0_i32, %c0_i32_0 : i32, i32, i32
  }
  func.func @transform_8(%arg0: i32, %arg1: i32) -> (i32, i32) {
    %c0_i32 = arith.constant 0 : i32
    %c0_i32_0 = arith.constant 0 : i32
    %c0_i32_1 = arith.constant 0 : i32
    return %c0_i32, %c0_i32_0 : i32, i32
  }
  func.func @transform_9(%arg0: i32, %arg1: i32) -> (i32, i32, i32) {
    %c0_i32 = arith.constant 0 : i32
    %c0_i32_0 = arith.constant 0 : i32
    %c0_i32_1 = arith.constant 0 : i32
    return %arg0, %c0_i32, %c0_i32_0 : i32, i32, i32
  }
}

</mosaic_0001>

<llo_original>
// kernel: tpu_custom_call.1
$region0: #{tpu_custom_call.1}
  #allocation0 [shape = 'u32[]', space=smem, size = 0x4, offset = 0x4, fixed_abs, tag = 'smem constant byte address 0x4 - core index']
  #allocation1 [shape = 'u32[144,128]{1,0:T(1,128)}', space=vmem, size = 0x12000, scoped, tag = 'internal scratch']
  #allocation2 [shape = 'f32[8,32]{1,0:T(8,128)}', space=vmem, size = 0x1000, scoped, tag = 'scratch operand']
  %s0 = inlined_call_operand.hbm [shape: f32[2,8,32], index: 0, kind: input, shape index: {}]
  %s1 = inlined_call_operand.hbm [shape: f32[4,32,8], index: 1, kind: input, shape index: {}]
  %s2 = inlined_call_operand.hbm [shape: f32[4,32,8], index: 2, kind: input, shape index: {}]
  %s3 = inlined_call_operand.hbm [shape: f32[4,32,8], index: 3, kind: input, shape index: {}]
  %s4 = inlined_call_operand.hbm [shape: f32[4,8,32], index: 4, kind: input, shape index: {}]
  %s5 = inlined_call_operand.hbm [shape: f32[4,1,8], index: 5, kind: input, shape index: {}]
  %s6 = inlined_call_operand.hbm [shape: f32[4,1,8], index: 6, kind: input, shape index: {}]
  %s7 = inlined_call_operand.hbm [shape: f32[4,1,8], index: 7, kind: input, shape index: {}]
  %s8 = inlined_call_operand.hbm [shape: f32[1,32], index: 8, kind: input, shape index: {}]
  %s9 = inlined_call_operand.hbm [shape: f32[2,8,32], index: 9, kind: output, shape index: {}]
  %s10 = sld [smem:[#allocation0]]
  $region113: #{tpu_custom_call.1} parent=0
    _
  %s12 = ssub.s32 1, %s10
  %s13 = scalar_select 0, %s12, %s10
  $region1: #{tpu_custom_call.1} parent=0
    #allocation3 [shape = 'u8[8192]{0}', space=vmem, size = 0x2000, scoped, tag = 'input window, operand 0']
    #allocation4 [shape = 's32[2]{0}', space=sflag, size = 0x8, scoped, tag = 'scoped memory for tpu_custom_call.1']
    #allocation5 [shape = 's32[2]{0}', space=sflag, size = 0x8, scoped, tag = 'scoped memory for tpu_custom_call.1']
    #allocation6 [shape = 'u8[32768]{0}', space=vmem, size = 0x8000, scoped, tag = 'input window, operand 1']
    #allocation7 [shape = 's32[2]{0}', space=sflag, size = 0x8, scoped, tag = 'scoped memory for tpu_custom_call.1']
    #allocation8 [shape = 'u8[32768]{0}', space=vmem, size = 0x8000, scoped, tag = 'input window, operand 2']
    #allocation9 [shape = 'u8[32768]{0}', space=vmem, size = 0x8000, scoped, tag = 'input window, operand 3']
    #allocation10 [shape = 's32[2]{0}', space=sflag, size = 0x8, scoped, tag = 'scoped memory for tpu_custom_call.1']
    #allocation11 [shape = 'u8[8192]{0}', space=vmem, size = 0x2000, scoped, tag = 'input window, operand 4']
    #allocation12 [shape = 'u8[1024]{0}', space=vmem, size = 0x400, scoped, tag = 'input window, operand 5']
    #allocation13 [shape = 's32[2]{0}', space=sflag, size = 0x8, scoped, tag = 'scoped memory for tpu_custom_call.1']
    #allocation14 [shape = 'u8[1024]{0}', space=vmem, size = 0x400, scoped, tag = 'input window, operand 6']
    #allocation15 [shape = 'u8[1024]{0}', space=vmem, size = 0x400, scoped, tag = 'input window, operand 7']
    #allocation16 [shape = 's32[2]{0}', space=sflag, size = 0x8, scoped, tag = 'scoped memory for tpu_custom_call.1']
    #allocation17 [shape = 'u8[512]{0}', space=vmem, size = 0x400, scoped, tag = 'input window, operand 8, single buffered']
    #allocation18 [shape = 'u8[8192]{0}', space=vmem, size = 0x2000, scoped, tag = 'output window, operand 0']
    %14 = vsyncpa [#allocation4], 0
    %s15 = scalar_lea.sflag [#allocation4], 1
    %16 = vsyncpa %s15, 0
    %17 = vsyncpa [#allocation7], 0
    %s18 = scalar_lea.sflag [#allocation7], 1
    %19 = vsyncpa %s18, 0
    %20 = vsyncpa [#allocation10], 0
    %s21 = scalar_lea.sflag [#allocation10], 1
    %22 = vsyncpa %s21, 0
    %23 = vsyncpa [#allocation13], 0
    %s24 = scalar_lea.sflag [#allocation13], 1
    %25 = vsyncpa %s24, 0
    %26 = vsyncpa [#allocation16], 0
    %s27 = scalar_lea.sflag [#allocation16], 1
    %28 = vsyncpa %s27, 0
    %29 = vsyncpa [#allocation5], 0
    %s30 = scalar_lea.sflag [#allocation5], 1
    %31 = vsyncpa %s30, 0
    loop: start=0, step=1, limit=10
    $region2: #{tpu_custom_call.1} parent=1 // loop_pre_header
      _
    $region3: #{tpu_custom_call.1} parent=1 // loop_header
      %s33 = sphi 0, %s37
      %p34 = scmp.ge.s32.totalorder %s33, 10
      %s40 = sphi 0, %s52
      %s41 = sphi 0, %s48
      %s42 = sphi 0, %s40
      %s43 = sphi 0, %s41
      %s44 = sphi 0, %s42
      %s45 = sphi 0, %s43
      %s55 = sphi 0, %s57
      %s58 = sphi 0, %s55
      %s59 = sphi 0, %s58
      %s75 = sphi 0, %s59
      %s81 = sphi 0, %s83
      %s84 = sphi 0, %s81
      %s85 = sphi 0, %s84
      %s101 = sphi 0, %s85
      %s107 = sphi 0, %s109
      %s110 = sphi 0, %s107
      %s111 = sphi 0, %s110
      %s127 = sphi 0, %s111
      %s133 = sphi 0, %s135
      %s136 = sphi 0, %s133
      %s137 = sphi 0, %s136
      %s153 = sphi 0, %s137
      %s159 = sphi 0, %s161
      %s162 = sphi 0, %s159
      %s163 = sphi 0, %s162
      %s179 = sphi 0, %s163
      %s185 = sphi 0, %s187
      %s188 = sphi 0, %s185
      %s189 = sphi 0, %s188
      %s205 = sphi 0, %s189
      %s211 = sphi 0, %s213
      %s214 = sphi 0, %s211
      %s215 = sphi 0, %s214
      %s231 = sphi 0, %s215
      %s237 = sphi 0, %s239
      %s240 = sphi 0, %s237
      %s241 = sphi 0, %s240
      %s257 = sphi 0, %s241
      %s261 = sphi 0, %s261
      %s263 = sphi 0, %s261
      %s264 = sphi 0, %s263
      %s278 = sphi 0, %s264
      %s284 = sphi 0, %s286
      %s287 = sphi 0, %s284
      %s288 = sphi 0, %s287
      %s304 = sphi 0, %s288
    $region4: #{tpu_custom_call.1} parent=1 // loop_header_branch
      %36 = sbr.rel (%p34) target = $region8
    $region5: #{tpu_custom_call.1} parent=1 // loop_body
      %s38 = ssub.s32 %s33, 1
      %s39 = ssub.s32 %s33, 2
      %s46 = sadd.s32 1, %s41
      %p47 = scmp.ge.s32.totalorder %s46, 4
      %s48 = scalar_select %p47, 0, %s46
      %s49 = sadd.s32 1, %s40
      %s50 = scalar_select %p47, %s49, %s40
      %p51 = scmp.ge.s32.totalorder %s50, 2
      %s52 = scalar_select %p51, 0, %s50
      %s53 = ssub.s32 %s40, %s52
      %p54 = scmp.eq.s32.totalorder %s53, 0
      %s56 = sadd.s32 %s55, 1
      %s57 = scalar_select %p54, %s55, %s56
      %p60 = pneg %p54
      %p61 = scmp.eq.s32.totalorder %s33, 7
      %p62 = por %p60, %p61
      %p63 = scmp.ne.s32.totalorder %s55, %s58
      %p64 = scmp.eq.s32.totalorder %s33, 0
      %p65 = por %p63, %p64
      %p66 = scmp.ne.s32.totalorder %s55, %s58
      %p67 = scmp.eq.s32.totalorder %s38, 7
      %p68 = por %p66, %p67
      %p69 = scmp.ne.s32.totalorder %s58, %s59
      %p70 = scmp.eq.s32.totalorder %s38, 0
      %p71 = por %p69, %p70
      %p72 = scmp.ne.s32.totalorder %s58, %s59
      %p73 = scmp.eq.s32.totalorder %s39, 7
      %p74 = por %p72, %p73
      %p76 = scmp.ne.s32.totalorder %s59, %s75
      %p77 = scmp.eq.s32.totalorder %s39, 0
      %p78 = por %p76, %p77
      %s79 = ssub.s32 %s41, %s48
      %p80 = scmp.eq.s32.totalorder %s79, 0
      %s82 = sadd.s32 %s81, 1
      %s83 = scalar_select %p80, %s81, %s82
      %p86 = pneg %p80
      %p87 = scmp.eq.s32.totalorder %s33, 7
      %p88 = por %p86, %p87
      %p89 = scmp.ne.s32.totalorder %s81, %s84
      %p90 = scmp.eq.s32.totalorder %s33, 0
      %p91 = por %p89, %p90
      %p92 = scmp.ne.s32.totalorder %s81, %s84
      %p93 = scmp.eq.s32.totalorder %s38, 7
      %p94 = por %p92, %p93
      %p95 = scmp.ne.s32.totalorder %s84, %s85
      %p96 = scmp.eq.s32.totalorder %s38, 0
      %p97 = por %p95, %p96
      %p98 = scmp.ne.s32.totalorder %s84, %s85
      %p99 = scmp.eq.s32.totalorder %s39, 7
      %p100 = por %p98, %p99
      %p102 = scmp.ne.s32.totalorder %s85, %s101
      %p103 = scmp.eq.s32.totalorder %s39, 0
      %p104 = por %p102, %p103
      %s105 = ssub.s32 %s41, %s48
      %p106 = scmp.eq.s32.totalorder %s105, 0
      %s108 = sadd.s32 %s107, 1
      %s109 = scalar_select %p106, %s107, %s108
      %p112 = pneg %p106
      %p113 = scmp.eq.s32.totalorder %s33, 7
      %p114 = por %p112, %p113
      %p115 = scmp.ne.s32.totalorder %s107, %s110
      %p116 = scmp.eq.s32.totalorder %s33, 0
      %p117 = por %p115, %p116
      %p118 = scmp.ne.s32.totalorder %s107, %s110
      %p119 = scmp.eq.s32.totalorder %s38, 7
      %p120 = por %p118, %p119
      %p121 = scmp.ne.s32.totalorder %s110, %s111
      %p122 = scmp.eq.s32.totalorder %s38, 0
      %p123 = por %p121, %p122
      %p124 = scmp.ne.s32.totalorder %s110, %s111
      %p125 = scmp.eq.s32.totalorder %s39, 7
      %p126 = por %p124, %p125
      %p128 = scmp.ne.s32.totalorder %s111, %s127
      %p129 = scmp.eq.s32.totalorder %s39, 0
      %p130 = por %p128, %p129
      %s131 = ssub.s32 %s41, %s48
      %p132 = scmp.eq.s32.totalorder %s131, 0
      %s134 = sadd.s32 %s133, 1
      %s135 = scalar_select %p132, %s133, %s134
      %p138 = pneg %p132
      %p139 = scmp.eq.s32.totalorder %s33, 7
      %p140 = por %p138, %p139
      %p141 = scmp.ne.s32.totalorder %s133, %s136
      %p142 = scmp.eq.s32.totalorder %s33, 0
      %p143 = por %p141, %p142
      %p144 = scmp.ne.s32.totalorder %s133, %s136
      %p145 = scmp.eq.s32.totalorder %s38, 7
      %p146 = por %p144, %p145
      %p147 = scmp.ne.s32.totalorder %s136, %s137
      %p148 = scmp.eq.s32.totalorder %s38, 0
      %p149 = por %p147, %p148
      %p150 = scmp.ne.s32.totalorder %s136, %s137
      %p151 = scmp.eq.s32.totalorder %s39, 7
      %p152 = por %p150, %p151
      %p154 = scmp.ne.s32.totalorder %s137, %s153
      %p155 = scmp.eq.s32.totalorder %s39, 0
      %p156 = por %p154, %p155
      %s157 = ssub.s32 %s41, %s48
      %p158 = scmp.eq.s32.totalorder %s157, 0
      %s160 = sadd.s32 %s159, 1
      %s161 = scalar_select %p158, %s159, %s160
      %p164 = pneg %p158
      %p165 = scmp.eq.s32.totalorder %s33, 7
      %p166 = por %p164, %p165
      %p167 = scmp.ne.s32.totalorder %s159, %s162
      %p168 = scmp.eq.s32.totalorder %s33, 0
      %p169 = por %p167, %p168
      %p170 = scmp.ne.s32.totalorder %s159, %s162
      %p171 = scmp.eq.s32.totalorder %s38, 7
      %p172 = por %p170, %p171
      %p173 = scmp.ne.s32.totalorder %s162, %s163
      %p174 = scmp.eq.s32.totalorder %s38, 0
      %p175 = por %p173, %p174
      %p176 = scmp.ne.s32.totalorder %s162, %s163
      %p177 = scmp.eq.s32.totalorder %s39, 7
      %p178 = por %p176, %p177
      %p180 = scmp.ne.s32.totalorder %s163, %s179
      %p181 = scmp.eq.s32.totalorder %s39, 0
      %p182 = por %p180, %p181
      %s183 = ssub.s32 %s41, %s48
      %p184 = scmp.eq.s32.totalorder %s183, 0
      %s186 = sadd.s32 %s185, 1
      %s187 = scalar_select %p184, %s185, %s186
      %p190 = pneg %p184
      %p191 = scmp.eq.s32.totalorder %s33, 7
      %p192 = por %p190, %p191
      %p193 = scmp.ne.s32.totalorder %s185, %s188
      %p194 = scmp.eq.s32.totalorder %s33, 0
      %p195 = por %p193, %p194
      %p196 = scmp.ne.s32.totalorder %s185, %s188
      %p197 = scmp.eq.s32.totalorder %s38, 7
      %p198 = por %p196, %p197
      %p199 = scmp.ne.s32.totalorder %s188, %s189
      %p200 = scmp.eq.s32.totalorder %s38, 0
      %p201 = por %p199, %p200
      %p202 = scmp.ne.s32.totalorder %s188, %s189
      %p203 = scmp.eq.s32.totalorder %s39, 7
      %p204 = por %p202, %p203
      %p206 = scmp.ne.s32.totalorder %s189, %s205
      %p207 = scmp.eq.s32.totalorder %s39, 0
      %p208 = por %p206, %p207
      %s209 = ssub.s32 %s41, %s48
      %p210 = scmp.eq.s32.totalorder %s209, 0
      %s212 = sadd.s32 %s211, 1
      %s213 = scalar_select %p210, %s211, %s212
      %p216 = pneg %p210
      %p217 = scmp.eq.s32.totalorder %s33, 7
      %p218 = por %p216, %p217
      %p219 = scmp.ne.s32.totalorder %s211, %s214
      %p220 = scmp.eq.s32.totalorder %s33, 0
      %p221 = por %p219, %p220
      %p222 = scmp.ne.s32.totalorder %s211, %s214
      %p223 = scmp.eq.s32.totalorder %s38, 7
      %p224 = por %p222, %p223
      %p225 = scmp.ne.s32.totalorder %s214, %s215
      %p226 = scmp.eq.s32.totalorder %s38, 0
      %p227 = por %p225, %p226
      %p228 = scmp.ne.s32.totalorder %s214, %s215
      %p229 = scmp.eq.s32.totalorder %s39, 7
      %p230 = por %p228, %p229
      %p232 = scmp.ne.s32.totalorder %s215, %s231
      %p233 = scmp.eq.s32.totalorder %s39, 0
      %p234 = por %p232, %p233
      %s235 = ssub.s32 %s41, %s48
      %p236 = scmp.eq.s32.totalorder %s235, 0
      %s238 = sadd.s32 %s237, 1
      %s239 = scalar_select %p236, %s237, %s238
      %p242 = pneg %p236
      %p243 = scmp.eq.s32.totalorder %s33, 7
      %p244 = por %p242, %p243
      %p245 = scmp.ne.s32.totalorder %s237, %s240
      %p246 = scmp.eq.s32.totalorder %s33, 0
      %p247 = por %p245, %p246
      %p248 = scmp.ne.s32.totalorder %s237, %s240
      %p249 = scmp.eq.s32.totalorder %s38, 7
      %p250 = por %p248, %p249
      %p251 = scmp.ne.s32.totalorder %s240, %s241
      %p252 = scmp.eq.s32.totalorder %s38, 0
      %p253 = por %p251, %p252
      %p254 = scmp.ne.s32.totalorder %s240, %s241
      %p255 = scmp.eq.s32.totalorder %s39, 7
      %p256 = por %p254, %p255
      %p258 = scmp.ne.s32.totalorder %s241, %s257
      %p259 = scmp.eq.s32.totalorder %s39, 0
      %p260 = por %p258, %p259
      %s262 = sadd.s32 %s261, 1
      %p265 = scmp.eq.s32.totalorder %s33, 7
      %p266 = scmp.ne.s32.totalorder %s261, %s263
      %p267 = scmp.eq.s32.totalorder %s33, 0
      %p268 = por %p266, %p267
      %p269 = scmp.ne.s32.totalorder %s261, %s263
      %p270 = scmp.eq.s32.totalorder %s38, 7
      %p271 = por %p269, %p270
      %p272 = scmp.ne.s32.totalorder %s263, %s264
      %p273 = scmp.eq.s32.totalorder %s38, 0
      %p274 = por %p272, %p273
      %p275 = scmp.ne.s32.totalorder %s263, %s264
      %p276 = scmp.eq.s32.totalorder %s39, 7
      %p277 = por %p275, %p276
      %p279 = scmp.ne.s32.totalorder %s264, %s278
      %p280 = scmp.eq.s32.totalorder %s39, 0
      %p281 = por %p279, %p280
      %s282 = ssub.s32 %s40, %s52
      %p283 = scmp.eq.s32.totalorder %s282, 0
      %s285 = sadd.s32 %s284, 1
      %s286 = scalar_select %p283, %s284, %s285
      %p289 = pneg %p283
      %p290 = scmp.eq.s32.totalorder %s33, 7
      %p291 = por %p289, %p290
      %p292 = scmp.ne.s32.totalorder %s284, %s287
      %p293 = scmp.eq.s32.totalorder %s33, 0
      %p294 = por %p292, %p293
      %p295 = scmp.ne.s32.totalorder %s284, %s287
      %p296 = scmp.eq.s32.totalorder %s38, 7
      %p297 = por %p295, %p296
      %p298 = scmp.ne.s32.totalorder %s287, %s288
      %p299 = scmp.eq.s32.totalorder %s38, 0
      %p300 = por %p298, %p299
      %p301 = scmp.ne.s32.totalorder %s287, %s288
      %p302 = scmp.eq.s32.totalorder %s39, 7
      %p303 = por %p301, %p302
      %p305 = scmp.ne.s32.totalorder %s288, %s304
      %p306 = scmp.eq.s32.totalorder %s39, 0
      %p307 = por %p305, %p306
      %p308 = scmp.le.s32.totalorder 1, %s33
      %p309 = scmp.lt.s32.totalorder %s33, 9
      %p310 = pnand %p308, %p309
      %p311 = pneg %p310
      // Predicated region
      $region9: #{tpu_custom_call.1} parent=5 // pred_check
        _
      $region10: #{tpu_custom_call.1} parent=5 // pred_check_branch
        %313 = sbr.rel (%p310) target = $region12
      $region11: #{tpu_custom_call.1} parent=5 // pred_region
        %s314 = ssub.s32 %s33, 1
        // Predicated region
        $region13: #{tpu_custom_call.1} parent=11 // pred_check
          %p315 = pneg %p274
        $region14: #{tpu_custom_call.1} parent=11 // pred_check_branch
          %317 = sbr.rel (%p315) target = $region16
        $region15: #{tpu_custom_call.1} parent=11 // pred_region
          %s319 = ssub.s32 16, 16
          %320 = vsyncadd [#allocation16], %s319
          %s322 = sshll.u32 [#allocation17], 4
          %s323 = int_to_ptr.vmem [resolvable:$true] %s322
          %325 = dma.hbm_to_vmem [thread:$0]  %s8, 16, %s323, [#allocation16]
        $region16: #{tpu_custom_call.1} parent=11 // pred_fallthru
          _
      $region12: #{tpu_custom_call.1} parent=5 // pred_fallthru
        _
      %p326 = scmp.lt.s32.totalorder %s33, 8
      // Predicated region
      $region17: #{tpu_custom_call.1} parent=5 // pred_check
        %p327 = pneg %p326
      $region18: #{tpu_custom_call.1} parent=5 // pred_check_branch
        %329 = sbr.rel (%p327) target = $region20
      $region19: #{tpu_custom_call.1} parent=5 // pred_region
        // Predicated region
        $region21: #{tpu_custom_call.1} parent=19 // pred_check
          %p330 = pneg %p65
        $region22: #{tpu_custom_call.1} parent=19 // pred_check_branch
          %332 = sbr.rel (%p330) target = $region24
        $region23: #{tpu_custom_call.1} parent=19 // pred_region
          %s333 = sand.u32 %s55, 1
          %s334 = scalar_lea.sflag [#allocation4], %s333
          %s335 = sand.u32 %s55, 1
          %s336 = smul.addr %s335, 8
          %s337 = scalar_lea.vmem [#allocation3], %s336
          %s339 = ssub.s32 128, 128
          %340 = vsyncadd %s334, %s339
          %s341 = smul.addr %s40, 128
          %s342 = scalar_lea.hbm %s0, %s341
          %s344 = sshll.u32 %s337, 4
          %s345 = int_to_ptr.vmem [resolvable:$true] %s344
          %347 = dma.hbm_to_vmem [thread:$0]  %s342, 128, %s345, %s334
        $region24: #{tpu_custom_call.1} parent=19 // pred_fallthru
          _
        // Predicated region
        $region25: #{tpu_custom_call.1} parent=19 // pred_check
          %p348 = pneg %p91
        $region26: #{tpu_custom_call.1} parent=19 // pred_check_branch
          %350 = sbr.rel (%p348) target = $region28
        $region27: #{tpu_custom_call.1} parent=19 // pred_region
          %s351 = sand.u32 %s33, 1
          %s352 = scalar_lea.sflag [#allocation7], %s351
          %s353 = sand.u32 %s81, 1
          %s354 = smul.addr %s353, 32
          %s355 = scalar_lea.vmem [#allocation6], %s354
          %s357 = ssub.s32 512, 512
          %358 = vsyncadd %s352, %s357
          %s359 = smul.addr %s41, 4
          %s360 = smul.addr %s359, 128
          %s361 = scalar_lea.hbm %s1, %s360
          %s362 = sshll.u32 %s355, 4
          %s363 = int_to_ptr.vmem [resolvable:$true] %s362
          %368 = dma.hbm_to_vmem [thread:$0]  %s361, 512, %s363, %s352, 128, 128, 8
        $region28: #{tpu_custom_call.1} parent=19 // pred_fallthru
          _
        // Predicated region
        $region29: #{tpu_custom_call.1} parent=19 // pred_check
          %p369 = pneg %p117
        $region30: #{tpu_custom_call.1} parent=19 // pred_check_branch
          %371 = sbr.rel (%p369) target = $region32
        $region31: #{tpu_custom_call.1} parent=19 // pred_region
          %s372 = sand.u32 %s33, 1
          %s373 = scalar_lea.sflag [#allocation7], %s372
          %s374 = sand.u32 %s107, 1
          %s375 = smul.addr %s374, 32
          %s376 = scalar_lea.vmem [#allocation8], %s375
          %s378 = ssub.s32 512, 512
          %379 = vsyncadd %s373, %s378
          %s380 = smul.addr %s41, 4
          %s381 = smul.addr %s380, 128
          %s382 = scalar_lea.hbm %s2, %s381
          %s383 = sshll.u32 %s376, 4
          %s384 = int_to_ptr.vmem [resolvable:$true] %s383
          %389 = dma.hbm_to_vmem [thread:$0]  %s382, 512, %s384, %s373, 128, 128, 8
        $region32: #{tpu_custom_call.1} parent=19 // pred_fallthru
          _
        // Predicated region
        $region33: #{tpu_custom_call.1} parent=19 // pred_check
          %p390 = pneg %p143
        $region34: #{tpu_custom_call.1} parent=19 // pred_check_branch
          %392 = sbr.rel (%p390) target = $region36
        $region35: #{tpu_custom_call.1} parent=19 // pred_region
          %s393 = sand.u32 %s33, 1
          %s394 = scalar_lea.sflag [#allocation10], %s393
          %s395 = sand.u32 %s133, 1
          %s396 = smul.addr %s395, 32
          %s397 = scalar_lea.vmem [#allocation9], %s396
          %s399 = ssub.s32 512, 512
          %400 = vsyncadd %s394, %s399
          %s401 = smul.addr %s41, 4
          %s402 = smul.addr %s401, 128
          %s403 = scalar_lea.hbm %s3, %s402
          %s404 = sshll.u32 %s397, 4
          %s405 = int_to_ptr.vmem [resolvable:$true] %s404
          %410 = dma.hbm_to_vmem [thread:$0]  %s403, 512, %s405, %s394, 128, 128, 8
        $region36: #{tpu_custom_call.1} parent=19 // pred_fallthru
          _
        // Predicated region
        $region37: #{tpu_custom_call.1} parent=19 // pred_check
          %p411 = pneg %p169
        $region38: #{tpu_custom_call.1} parent=19 // pred_check_branch
          %413 = sbr.rel (%p411) target = $region40
        $region39: #{tpu_custom_call.1} parent=19 // pred_region
          %s414 = sand.u32 %s33, 1
          %s415 = scalar_lea.sflag [#allocation10], %s414
          %s416 = sand.u32 %s159, 1
          %s417 = smul.addr %s416, 8
          %s418 = scalar_lea.vmem [#allocation11], %s417
          %s420 = ssub.s32 128, 128
          %421 = vsyncadd %s415, %s420
          %s422 = smul.addr %s41, 128
          %s423 = scalar_lea.hbm %s4, %s422
          %s425 = sshll.u32 %s418, 4
          %s426 = int_to_ptr.vmem [resolvable:$true] %s425
          %428 = dma.hbm_to_vmem [thread:$0]  %s423, 128, %s426, %s415
        $region40: #{tpu_custom_call.1} parent=19 // pred_fallthru
          _
        // Predicated region
        $region41: #{tpu_custom_call.1} parent=19 // pred_check
          %p429 = pneg %p195
        $region42: #{tpu_custom_call.1} parent=19 // pred_check_branch
          %431 = sbr.rel (%p429) target = $region44
        $region43: #{tpu_custom_call.1} parent=19 // pred_region
          %s432 = sand.u32 %s33, 1
          %s433 = scalar_lea.sflag [#allocation13], %s432
          %s434 = sand.u32 %s185, 1
          %s435 = scalar_lea.vmem [#allocation12], %s434
          %s437 = ssub.s32 16, 16
          %438 = vsyncadd %s433, %s437
          %s439 = smul.addr %s41, 16
          %s440 = scalar_lea.hbm %s5, %s439
          %s442 = sshll.u32 %s435, 4
          %s443 = int_to_ptr.vmem [resolvable:$true] %s442
          %445 = dma.hbm_to_vmem [thread:$0]  %s440, 16, %s443, %s433
        $region44: #{tpu_custom_call.1} parent=19 // pred_fallthru
          _
        // Predicated region
        $region45: #{tpu_custom_call.1} parent=19 // pred_check
          %p446 = pneg %p221
        $region46: #{tpu_custom_call.1} parent=19 // pred_check_branch
          %448 = sbr.rel (%p446) target = $region48
        $region47: #{tpu_custom_call.1} parent=19 // pred_region
          %s449 = sand.u32 %s33, 1
          %s450 = scalar_lea.sflag [#allocation13], %s449
          %s451 = sand.u32 %s211, 1
          %s452 = scalar_lea.vmem [#allocation14], %s451
          %s454 = ssub.s32 16, 16
          %455 = vsyncadd %s450, %s454
          %s456 = smul.addr %s41, 16
          %s457 = scalar_lea.hbm %s6, %s456
          %s459 = sshll.u32 %s452, 4
          %s460 = int_to_ptr.vmem [resolvable:$true] %s459
          %462 = dma.hbm_to_vmem [thread:$0]  %s457, 16, %s460, %s450
        $region48: #{tpu_custom_call.1} parent=19 // pred_fallthru
          _
        // Predicated region
        $region49: #{tpu_custom_call.1} parent=19 // pred_check
          %p463 = pneg %p247
        $region50: #{tpu_custom_call.1} parent=19 // pred_check_branch
          %465 = sbr.rel (%p463) target = $region52
        $region51: #{tpu_custom_call.1} parent=19 // pred_region
          %s466 = sand.u32 %s33, 1
          %s467 = scalar_lea.sflag [#allocation16], %s466
          %s468 = sand.u32 %s237, 1
          %s469 = scalar_lea.vmem [#allocation15], %s468
          %s471 = ssub.s32 16, 16
          %472 = vsyncadd %s467, %s471
          %s473 = smul.addr %s41, 16
          %s474 = scalar_lea.hbm %s7, %s473
          %s476 = sshll.u32 %s469, 4
          %s477 = int_to_ptr.vmem [resolvable:$true] %s476
          %479 = dma.hbm_to_vmem [thread:$0]  %s474, 16, %s477, %s467
        $region52: #{tpu_custom_call.1} parent=19 // pred_fallthru
          _
      $region20: #{tpu_custom_call.1} parent=5 // pred_fallthru
        _
      %p480 = scmp.le.s32.totalorder 1, %s33
      %p481 = scmp.lt.s32.totalorder %s33, 9
      %p482 = pnand %p480, %p481
      %p483 = pneg %p482
      // Predicated region
      $region53: #{tpu_custom_call.1} parent=5 // pred_check
        _
      $region54: #{tpu_custom_call.1} parent=5 // pred_check_branch
        %485 = sbr.rel (%p482) target = $region56
      $region55: #{tpu_custom_call.1} parent=5 // pred_region
        %s486 = ssub.s32 %s33, 1
        %s487 = sand.u32 %s58, 1
        %s488 = scalar_lea.sflag [#allocation4], %s487
        %s489 = sand.u32 %s58, 1
        %s490 = smul.addr %s489, 8
        %s491 = scalar_lea.vmem [#allocation3], %s490
        // Predicated region
        $region57: #{tpu_custom_call.1} parent=55 // pred_check
          %p492 = pneg %p71
        $region58: #{tpu_custom_call.1} parent=55 // pred_check_branch
          %494 = sbr.rel (%p492) target = $region60
        $region59: #{tpu_custom_call.1} parent=55 // pred_region
          %495 = dma.done %s488, 128
        $region60: #{tpu_custom_call.1} parent=55 // pred_fallthru
          _
        %s496 = sand.u32 %s38, 1
        %s497 = scalar_lea.sflag [#allocation7], %s496
        %s498 = sand.u32 %s84, 1
        %s499 = smul.addr %s498, 32
        %s500 = scalar_lea.vmem [#allocation6], %s499
        // Predicated region
        $region61: #{tpu_custom_call.1} parent=55 // pred_check
          %p501 = pneg %p97
        $region62: #{tpu_custom_call.1} parent=55 // pred_check_branch
          %503 = sbr.rel (%p501) target = $region64
        $region63: #{tpu_custom_call.1} parent=55 // pred_region
          %504 = dma.done %s497, 512
        $region64: #{tpu_custom_call.1} parent=55 // pred_fallthru
          _
        %s505 = sand.u32 %s38, 1
        %s506 = scalar_lea.sflag [#allocation7], %s505
        %s507 = sand.u32 %s110, 1
        %s508 = smul.addr %s507, 32
        %s509 = scalar_lea.vmem [#allocation8], %s508
        // Predicated region
        $region65: #{tpu_custom_call.1} parent=55 // pred_check
          %p510 = pneg %p123
        $region66: #{tpu_custom_call.1} parent=55 // pred_check_branch
          %512 = sbr.rel (%p510) target = $region68
        $region67: #{tpu_custom_call.1} parent=55 // pred_region
          %513 = dma.done %s506, 512
        $region68: #{tpu_custom_call.1} parent=55 // pred_fallthru
          _
        %s514 = sand.u32 %s38, 1
        %s515 = scalar_lea.sflag [#allocation10], %s514
        %s516 = sand.u32 %s136, 1
        %s517 = smul.addr %s516, 32
        %s518 = scalar_lea.vmem [#allocation9], %s517
        // Predicated region
        $region69: #{tpu_custom_call.1} parent=55 // pred_check
          %p519 = pneg %p149
        $region70: #{tpu_custom_call.1} parent=55 // pred_check_branch
          %521 = sbr.rel (%p519) target = $region72
        $region71: #{tpu_custom_call.1} parent=55 // pred_region
          %522 = dma.done %s515, 512
        $region72: #{tpu_custom_call.1} parent=55 // pred_fallthru
          _
        %s523 = sand.u32 %s38, 1
        %s524 = scalar_lea.sflag [#allocation10], %s523
        %s525 = sand.u32 %s162, 1
        %s526 = smul.addr %s525, 8
        %s527 = scalar_lea.vmem [#allocation11], %s526
        // Predicated region
        $region73: #{tpu_custom_call.1} parent=55 // pred_check
          %p528 = pneg %p175
        $region74: #{tpu_custom_call.1} parent=55 // pred_check_branch
          %530 = sbr.rel (%p528) target = $region76
        $region75: #{tpu_custom_call.1} parent=55 // pred_region
          %531 = dma.done %s524, 128
        $region76: #{tpu_custom_call.1} parent=55 // pred_fallthru
          _
        %s532 = sand.u32 %s38, 1
        %s533 = scalar_lea.sflag [#allocation13], %s532
        %s534 = sand.u32 %s188, 1
        %s535 = scalar_lea.vmem [#allocation12], %s534
        // Predicated region
        $region77: #{tpu_custom_call.1} parent=55 // pred_check
          %p536 = pneg %p201
        $region78: #{tpu_custom_call.1} parent=55 // pred_check_branch
          %538 = sbr.rel (%p536) target = $region80
        $region79: #{tpu_custom_call.1} parent=55 // pred_region
          %539 = dma.done %s533, 16
        $region80: #{tpu_custom_call.1} parent=55 // pred_fallthru
          _
        %s540 = sand.u32 %s38, 1
        %s541 = scalar_lea.sflag [#allocation13], %s540
        %s542 = sand.u32 %s214, 1
        %s543 = scalar_lea.vmem [#allocation14], %s542
        // Predicated region
        $region81: #{tpu_custom_call.1} parent=55 // pred_check
          %p544 = pneg %p227
        $region82: #{tpu_custom_call.1} parent=55 // pred_check_branch
          %546 = sbr.rel (%p544) target = $region84
        $region83: #{tpu_custom_call.1} parent=55 // pred_region
          %547 = dma.done %s541, 16
        $region84: #{tpu_custom_call.1} parent=55 // pred_fallthru
          _
        %s548 = sand.u32 %s38, 1
        %s549 = scalar_lea.sflag [#allocation16], %s548
        %s550 = sand.u32 %s240, 1
        %s551 = scalar_lea.vmem [#allocation15], %s550
        // Predicated region
        $region85: #{tpu_custom_call.1} parent=55 // pred_check
          %p552 = pneg %p253
        $region86: #{tpu_custom_call.1} parent=55 // pred_check_branch
          %554 = sbr.rel (%p552) target = $region88
        $region87: #{tpu_custom_call.1} parent=55 // pred_region
          %555 = dma.done %s549, 16
        $region88: #{tpu_custom_call.1} parent=55 // pred_fallthru
          _
        // Predicated region
        $region89: #{tpu_custom_call.1} parent=55 // pred_check
          %p556 = pneg %p274
        $region90: #{tpu_custom_call.1} parent=55 // pred_check_branch
          %558 = sbr.rel (%p556) target = $region92
        $region91: #{tpu_custom_call.1} parent=55 // pred_region
          %559 = dma.done [#allocation16], 16
        $region92: #{tpu_custom_call.1} parent=55 // pred_fallthru
          _
        %s560 = sand.u32 %s58, 1
        %s561 = scalar_lea.sflag [#allocation4], %s560
        %s562 = sand.u32 %s58, 1
        %s563 = smul.addr %s562, 8
        %s564 = scalar_lea.vmem [#allocation3], %s563
        %p565 = pneg %p71
        %p566 = pneg %p68
        %s567 = sand.u32 %s38, 1
        %s568 = scalar_lea.sflag [#allocation7], %s567
        %s569 = sand.u32 %s84, 1
        %s570 = smul.addr %s569, 32
        %s571 = scalar_lea.vmem [#allocation6], %s570
        %p572 = pneg %p97
        %p573 = pneg %p94
        %s574 = sand.u32 %s38, 1
        %s575 = scalar_lea.sflag [#allocation7], %s574
        %s576 = sand.u32 %s110, 1
        %s577 = smul.addr %s576, 32
        %s578 = scalar_lea.vmem [#allocation8], %s577
        %p579 = pneg %p123
        %p580 = pneg %p120
        %s581 = sand.u32 %s38, 1
        %s582 = scalar_lea.sflag [#allocation10], %s581
        %s583 = sand.u32 %s136, 1
        %s584 = smul.addr %s583, 32
        %s585 = scalar_lea.vmem [#allocation9], %s584
        %p586 = pneg %p149
        %p587 = pneg %p146
        %s588 = sand.u32 %s38, 1
        %s589 = scalar_lea.sflag [#allocation10], %s588
        %s590 = sand.u32 %s162, 1
        %s591 = smul.addr %s590, 8
        %s592 = scalar_lea.vmem [#allocation11], %s591
        %p593 = pneg %p175
        %p594 = pneg %p172
        %s595 = sand.u32 %s38, 1
        %s596 = scalar_lea.sflag [#allocation13], %s595
        %s597 = sand.u32 %s188, 1
        %s598 = scalar_lea.vmem [#allocation12], %s597
        %p599 = pneg %p201
        %p600 = pneg %p198
        %s601 = sand.u32 %s38, 1
        %s602 = scalar_lea.sflag [#allocation13], %s601
        %s603 = sand.u32 %s214, 1
        %s604 = scalar_lea.vmem [#allocation14], %s603
        %p605 = pneg %p227
        %p606 = pneg %p224
        %s607 = sand.u32 %s38, 1
        %s608 = scalar_lea.sflag [#allocation16], %s607
        %s609 = sand.u32 %s240, 1
        %s610 = scalar_lea.vmem [#allocation15], %s609
        %p611 = pneg %p253
        %p612 = pneg %p250
        %p613 = pneg %p274
        %p614 = pneg %p271
        %p615 = pneg %p300
        %p616 = pneg %p297
        %s617 = sand.u32 %s287, 1
        %s618 = scalar_lea.sflag [#allocation5], %s617
        %s619 = sand.u32 %s287, 1
        %s620 = smul.addr %s619, 8
        %s621 = scalar_lea.vmem [#allocation18], %s620
        %v622 = vld [vmem:[%s491] sm:$0xff]
        %v623 = vld [vmem:[%s500] sm:$0xff]
        %v624 = vld [vmem:[%s500 + $0x8] sm:$0xff]
        %v625 = vld [vmem:[%s500 + $0x10] sm:$0xff]
        %v626 = vld [vmem:[%s500 + $0x18] sm:$0xff]
        %v627 = vld [vmem:[%s535] sm:$0x1]
        %v629 = vlaneseq
        %v630 = vshrl.u32 %v629, 7
        %v631 = vsub.s32 0, %v630
        %v632 = vrot.slane %v627, %v631
        %vm634 = vcmask 261120
        %v636 = vsel %vm634, %v622, 0
        %638 = vmatprep.subr.mxu0 0.0
        %639 = vmatpush1.msra.mxu0 %v623
        %640 = vmatprep.subr.mxu0 0.0
        %641 = vmatpush1.msra.mxu0 %v624
        %642 = vmatprep.subr.mxu0 0.0
        %643 = vmatpush1.msra.mxu0 %v625
        %644 = vmatprep.subr.mxu0 0.0
        %645 = vmatpush1.msra.mxu0 %v626
        %646 = vmatprep.subr.mxu0 0.0
        %647 = vmatpush1.msra.mxu0 0.0
        %648 = vmatprep.subr.mxu0 0.0
        %649 = vmatpush1.msra.mxu0 0.0
        %650 = vmatprep.subr.mxu0 0.0
        %651 = vmatpush1.msra.mxu0 0.0
        %652 = vmatprep.subr.mxu0 0.0
        %653 = vmatpush1.msra.mxu0 0.0
        %654 = vmatprep.subr.mxu0 0.0
        %655 = vmatpush1.msra.mxu0 0.0
        %656 = vmatprep.subr.mxu0 0.0
        %657 = vmatpush1.msra.mxu0 0.0
        %658 = vmatprep.subr.mxu0 0.0
        %659 = vmatpush1.msra.mxu0 0.0
        %660 = vmatprep.subr.mxu0 0.0
        %661 = vmatpush1.msra.mxu0 0.0
        %662 = vmatprep.subr.mxu0 0.0
        %663 = vmatpush1.msra.mxu0 0.0
        %664 = vmatprep.subr.mxu0 0.0
        %665 = vmatpush1.msra.mxu0 0.0
        %666 = vmatprep.subr.mxu0 0.0
        %667 = vmatpush1.msra.mxu0 0.0
        %668 = vmatprep.subr.mxu0 0.0
        %669 = vmatpush1.msra.mxu0 0.0
        %670 = vmatprep.subr.mxu0 0.0
        %671 = vmatpush1.msra.mxu0 0.0
        %672 = vmatprep.subr.mxu0 0.0
        %673 = vmatpush1.msra.mxu0 0.0
        %674 = vmatprep.subr.mxu0 0.0
        %675 = vmatpush1.msra.mxu0 0.0
        %676 = vmatprep.subr.mxu0 0.0
        %677 = vmatpush1.msra.mxu0 0.0
        %678 = vmatprep.subr.mxu0 0.0
        %679 = vmatpush1.msra.mxu0 0.0
        %680 = vmatprep.subr.mxu0 0.0
        %681 = vmatpush1.msra.mxu0 0.0
        %682 = vmatprep.subr.mxu0 0.0
        %683 = vmatpush1.msra.mxu0 0.0
        %684 = vmatprep.subr.mxu0 0.0
        %685 = vmatpush1.msra.mxu0 0.0
        %686 = vmatprep.subr.mxu0 0.0
        %687 = vmatpush1.msra.mxu0 0.0
        %688 = vmatprep.subr.mxu0 0.0
        %689 = vmatpush1.msra.mxu0 0.0
        %690 = vmatprep.subr.mxu0 0.0
        %691 = vmatpush1.msra.mxu0 0.0
        %692 = vmatprep.subr.mxu0 0.0
        %693 = vmatpush1.msra.mxu0 0.0
        %694 = vmatprep.subr.mxu0 0.0
        %695 = vmatpush1.msra.mxu0 0.0
        %696 = vmatprep.subr.mxu0 0.0
        %697 = vmatpush1.msra.mxu0 0.0
        %698 = vmatprep.subr.mxu0 0.0
        %699 = vmatpush1.msra.mxu0 0.0
        %700 = vmatprep.subr.mxu0 0.0
        %701 = vmatpush1.msra.mxu0 0.0
        %702 = vmatprep.mubr.f32.mxu0 0.0
        %703 = vmatmul.mubr.f32.gmra.mrb[0].mxu0 %v636
        %v704 = vpop.f32.mrb[0].mxu0
        %v705 = vadd.f32 %v632, %v704
        %v706 = vpop.f32.mrb[0].mxu0
        %707 = vdwg.mxu0
        %v708 = vld [vmem:[%s509] sm:$0xff]
        %v709 = vld [vmem:[%s509 + $0x8] sm:$0xff]
        %v710 = vld [vmem:[%s509 + $0x10] sm:$0xff]
        %v711 = vld [vmem:[%s509 + $0x18] sm:$0xff]
        %v712 = vld [vmem:[%s543] sm:$0x1]
        %v714 = vlaneseq
        %v715 = vshrl.u32 %v714, 7
        %v716 = vsub.s32 0, %v715
        %v717 = vrot.slane %v712, %v716
        %719 = vmatprep.subr.mxu0 0.0
        %720 = vmatpush1.msra.mxu0 %v708
        %721 = vmatprep.subr.mxu0 0.0
        %722 = vmatpush1.msra.mxu0 %v709
        %723 = vmatprep.subr.mxu0 0.0
        %724 = vmatpush1.msra.mxu0 %v710
        %725 = vmatprep.subr.mxu0 0.0
        %726 = vmatpush1.msra.mxu0 %v711
        %727 = vmatprep.subr.mxu0 0.0
        %728 = vmatpush1.msra.mxu0 0.0
        %729 = vmatprep.subr.mxu0 0.0
        %730 = vmatpush1.msra.mxu0 0.0
        %731 = vmatprep.subr.mxu0 0.0
        %732 = vmatpush1.msra.mxu0 0.0
        %733 = vmatprep.subr.mxu0 0.0
        %734 = vmatpush1.msra.mxu0 0.0
        %735 = vmatprep.subr.mxu0 0.0
        %736 = vmatpush1.msra.mxu0 0.0
        %737 = vmatprep.subr.mxu0 0.0
        %738 = vmatpush1.msra.mxu0 0.0
        %739 = vmatprep.subr.mxu0 0.0
        %740 = vmatpush1.msra.mxu0 0.0
        %741 = vmatprep.subr.mxu0 0.0
        %742 = vmatpush1.msra.mxu0 0.0
        %743 = vmatprep.subr.mxu0 0.0
        %744 = vmatpush1.msra.mxu0 0.0
        %745 = vmatprep.subr.mxu0 0.0
        %746 = vmatpush1.msra.mxu0 0.0
        %747 = vmatprep.subr.mxu0 0.0
        %748 = vmatpush1.msra.mxu0 0.0
        %749 = vmatprep.subr.mxu0 0.0
        %750 = vmatpush1.msra.mxu0 0.0
        %751 = vmatprep.subr.mxu0 0.0
        %752 = vmatpush1.msra.mxu0 0.0
        %753 = vmatprep.subr.mxu0 0.0
        %754 = vmatpush1.msra.mxu0 0.0
        %755 = vmatprep.subr.mxu0 0.0
        %756 = vmatpush1.msra.mxu0 0.0
        %757 = vmatprep.subr.mxu0 0.0
        %758 = vmatpush1.msra.mxu0 0.0
        %759 = vmatprep.subr.mxu0 0.0
        %760 = vmatpush1.msra.mxu0 0.0
        %761 = vmatprep.subr.mxu0 0.0
        %762 = vmatpush1.msra.mxu0 0.0
        %763 = vmatprep.subr.mxu0 0.0
        %764 = vmatpush1.msra.mxu0 0.0
        %765 = vmatprep.subr.mxu0 0.0
        %766 = vmatpush1.msra.mxu0 0.0
        %767 = vmatprep.subr.mxu0 0.0
        %768 = vmatpush1.msra.mxu0 0.0
        %769 = vmatprep.subr.mxu0 0.0
        %770 = vmatpush1.msra.mxu0 0.0
        %771 = vmatprep.subr.mxu0 0.0
        %772 = vmatpush1.msra.mxu0 0.0
        %773 = vmatprep.subr.mxu0 0.0
        %774 = vmatpush1.msra.mxu0 0.0
        %775 = vmatprep.subr.mxu0 0.0
        %776 = vmatpush1.msra.mxu0 0.0
        %777 = vmatprep.subr.mxu0 0.0
        %778 = vmatpush1.msra.mxu0 0.0
        %779 = vmatprep.subr.mxu0 0.0
        %780 = vmatpush1.msra.mxu0 0.0
        %781 = vmatprep.subr.mxu0 0.0
        %782 = vmatpush1.msra.mxu0 0.0
        %783 = vmatprep.mubr.f32.mxu0 0.0
        %784 = vmatmul.mubr.f32.gmra.mrb[0].mxu0 %v636
        %v785 = vpop.f32.mrb[0].mxu0
        %v786 = vadd.f32 %v717, %v785
        %v787 = vpop.f32.mrb[0].mxu0
        %788 = vdwg.mxu0
        %v789 = vld [vmem:[%s518] sm:$0xff]
        %v790 = vld [vmem:[%s518 + $0x8] sm:$0xff]
        %v791 = vld [vmem:[%s518 + $0x10] sm:$0xff]
        %v792 = vld [vmem:[%s518 + $0x18] sm:$0xff]
        %v793 = vld [vmem:[%s551] sm:$0x1]
        %v795 = vlaneseq
        %v796 = vshrl.u32 %v795, 7
        %v797 = vsub.s32 0, %v796
        %v798 = vrot.slane %v793, %v797
        %800 = vmatprep.subr.mxu0 0.0
        %801 = vmatpush1.msra.mxu0 %v789
        %802 = vmatprep.subr.mxu0 0.0
        %803 = vmatpush1.msra.mxu0 %v790
        %804 = vmatprep.subr.mxu0 0.0
        %805 = vmatpush1.msra.mxu0 %v791
        %806 = vmatprep.subr.mxu0 0.0
        %807 = vmatpush1.msra.mxu0 %v792
        %808 = vmatprep.subr.mxu0 0.0
        %809 = vmatpush1.msra.mxu0 0.0
        %810 = vmatprep.subr.mxu0 0.0
        %811 = vmatpush1.msra.mxu0 0.0
        %812 = vmatprep.subr.mxu0 0.0
        %813 = vmatpush1.msra.mxu0 0.0
        %814 = vmatprep.subr.mxu0 0.0
        %815 = vmatpush1.msra.mxu0 0.0
        %816 = vmatprep.subr.mxu0 0.0
        %817 = vmatpush1.msra.mxu0 0.0
        %818 = vmatprep.subr.mxu0 0.0
        %819 = vmatpush1.msra.mxu0 0.0
        %820 = vmatprep.subr.mxu0 0.0
        %821 = vmatpush1.msra.mxu0 0.0
        %822 = vmatprep.subr.mxu0 0.0
        %823 = vmatpush1.msra.mxu0 0.0
        %824 = vmatprep.subr.mxu0 0.0
        %825 = vmatpush1.msra.mxu0 0.0
        %826 = vmatprep.subr.mxu0 0.0
        %827 = vmatpush1.msra.mxu0 0.0
        %828 = vmatprep.subr.mxu0 0.0
        %829 = vmatpush1.msra.mxu0 0.0
        %830 = vmatprep.subr.mxu0 0.0
        %831 = vmatpush1.msra.mxu0 0.0
        %832 = vmatprep.subr.mxu0 0.0
        %833 = vmatpush1.msra.mxu0 0.0
        %834 = vmatprep.subr.mxu0 0.0
        %835 = vmatpush1.msra.mxu0 0.0
        %836 = vmatprep.subr.mxu0 0.0
        %837 = vmatpush1.msra.mxu0 0.0
        %838 = vmatprep.subr.mxu0 0.0
        %839 = vmatpush1.msra.mxu0 0.0
        %840 = vmatprep.subr.mxu0 0.0
        %841 = vmatpush1.msra.mxu0 0.0
        %842 = vmatprep.subr.mxu0 0.0
        %843 = vmatpush1.msra.mxu0 0.0
        %844 = vmatprep.subr.mxu0 0.0
        %845 = vmatpush1.msra.mxu0 0.0
        %846 = vmatprep.subr.mxu0 0.0
        %847 = vmatpush1.msra.mxu0 0.0
        %848 = vmatprep.subr.mxu0 0.0
        %849 = vmatpush1.msra.mxu0 0.0
        %850 = vmatprep.subr.mxu0 0.0
        %851 = vmatpush1.msra.mxu0 0.0
        %852 = vmatprep.subr.mxu0 0.0
        %853 = vmatpush1.msra.mxu0 0.0
        %854 = vmatprep.subr.mxu0 0.0
        %855 = vmatpush1.msra.mxu0 0.0
        %856 = vmatprep.subr.mxu0 0.0
        %857 = vmatpush1.msra.mxu0 0.0
        %858 = vmatprep.subr.mxu0 0.0
        %859 = vmatpush1.msra.mxu0 0.0
        %860 = vmatprep.subr.mxu0 0.0
        %861 = vmatpush1.msra.mxu0 0.0
        %862 = vmatprep.subr.mxu0 0.0
        %863 = vmatpush1.msra.mxu0 0.0
        %864 = vmatprep.mubr.f32.mxu0 0.0
        %865 = vmatmul.mubr.f32.gmra.mrb[0].mxu0 %v636
        %v866 = vpop.f32.mrb[0].mxu0
        %v867 = vadd.f32 %v798, %v866
        %v868 = vpop.f32.mrb[0].mxu0
        %869 = vdwg.mxu0
        %v870 = vmul.f32 %v705, 0.35355338
        %vm871 = vcmask 64512
        %v873 = vsel %vm871, %v870, 0
        %v876 = vsel %vm871, %v786, 0
        %878 = vmatprep.subr.mxu0 0.0
        %879 = vmatpush1.xpose.msra.mxu0 %v876
        %880 = vmatprep.subr.mxu0 0.0
        %881 = vmatpush1.xpose.msra.mxu0 0.0
        %882 = vmatprep.subr.mxu0 0.0
        %883 = vmatpush1.xpose.msra.mxu0 0.0
        %884 = vmatprep.subr.mxu0 0.0
        %885 = vmatpush1.xpose.msra.mxu0 0.0
        %886 = vmatprep.subr.mxu0 0.0
        %887 = vmatpush1.xpose.msra.mxu0 0.0
        %888 = vmatprep.subr.mxu0 0.0
        %889 = vmatpush1.xpose.msra.mxu0 0.0
        %890 = vmatprep.subr.mxu0 0.0
        %891 = vmatpush1.xpose.msra.mxu0 0.0
        %892 = vmatprep.subr.mxu0 0.0
        %893 = vmatpush1.xpose.msra.mxu0 0.0
        %894 = vmatprep.subr.mxu0 0.0
        %895 = vmatpush1.xpose.msra.mxu0 0.0
        %896 = vmatprep.subr.mxu0 0.0
        %897 = vmatpush1.xpose.msra.mxu0 0.0
        %898 = vmatprep.subr.mxu0 0.0
        %899 = vmatpush1.xpose.msra.mxu0 0.0
        %900 = vmatprep.subr.mxu0 0.0
        %901 = vmatpush1.xpose.msra.mxu0 0.0
        %902 = vmatprep.subr.mxu0 0.0
        %903 = vmatpush1.xpose.msra.mxu0 0.0
        %904 = vmatprep.subr.mxu0 0.0
        %905 = vmatpush1.xpose.msra.mxu0 0.0
        %906 = vmatprep.subr.mxu0 0.0
        %907 = vmatpush1.xpose.msra.mxu0 0.0
        %908 = vmatprep.subr.mxu0 0.0
        %909 = vmatpush1.xpose.msra.mxu0 0.0
        %910 = vmatprep.subr.mxu0 0.0
        %911 = vmatpush1.xpose.msra.mxu0 0.0
        %912 = vmatprep.subr.mxu0 0.0
        %913 = vmatpush1.xpose.msra.mxu0 0.0
        %914 = vmatprep.subr.mxu0 0.0
        %915 = vmatpush1.xpose.msra.mxu0 0.0
        %916 = vmatprep.subr.mxu0 0.0
        %917 = vmatpush1.xpose.msra.mxu0 0.0
        %918 = vmatprep.subr.mxu0 0.0
        %919 = vmatpush1.xpose.msra.mxu0 0.0
        %920 = vmatprep.subr.mxu0 0.0
        %921 = vmatpush1.xpose.msra.mxu0 0.0
        %922 = vmatprep.subr.mxu0 0.0
        %923 = vmatpush1.xpose.msra.mxu0 0.0
        %924 = vmatprep.subr.mxu0 0.0
        %925 = vmatpush1.xpose.msra.mxu0 0.0
        %926 = vmatprep.subr.mxu0 0.0
        %927 = vmatpush1.xpose.msra.mxu0 0.0
        %928 = vmatprep.subr.mxu0 0.0
        %929 = vmatpush1.xpose.msra.mxu0 0.0
        %930 = vmatprep.subr.mxu0 0.0
        %931 = vmatpush1.xpose.msra.mxu0 0.0
        %932 = vmatprep.subr.mxu0 0.0
        %933 = vmatpush1.xpose.msra.mxu0 0.0
        %934 = vmatprep.subr.mxu0 0.0
        %935 = vmatpush1.xpose.msra.mxu0 0.0
        %936 = vmatprep.subr.mxu0 0.0
        %937 = vmatpush1.xpose.msra.mxu0 0.0
        %938 = vmatprep.subr.mxu0 0.0
        %939 = vmatpush1.xpose.msra.mxu0 0.0
        %940 = vmatprep.subr.mxu0 0.0
        %941 = vmatpush1.xpose.msra.mxu0 0.0
        %942 = vmatprep.mubr.f32.mxu0 0.0
        %943 = vmatmul.mubr.f32.gmra.mrb[0].mxu0 %v873
        %v944 = vpop.f32.mrb[0].mxu0
        %v945 = vadd.f32 0.0, %v944
        %v946 = vpop.f32.mrb[0].mxu0
        %947 = vdwg.mxu0
        %v948 = vsel %vm871, %v945, -inf
        %949 = vmax.xlane.f32.xlu0 %v948
        %v950 = vpop.xlane.xlu0 %949
        %v951 = vsub.f32 %v945, %v950
        %v952 = vmul.f32 %v951, 1.442695
        %v953 = vpow.pop %v952
        %v954 = vsel %vm871, %v953, 0.0
        %955 = vadd.xlane.f32.xlu0 %v954
        %v956 = vpop.xlane.xlu0 %955
        %v957 = vrcp.pop %v956
        %v958 = vmul.f32 %v953, %v957
        %v960 = vsel %vm871, %v958, 0
        %962 = vmatprep.subr.mxu0 0.0
        %963 = vmatpush1.msra.mxu0 %v867
        %964 = vmatprep.subr.mxu0 0.0
        %965 = vmatpush1.msra.mxu0 0.0
        %966 = vmatprep.subr.mxu0 0.0
        %967 = vmatpush1.msra.mxu0 0.0
        %968 = vmatprep.subr.mxu0 0.0
        %969 = vmatpush1.msra.mxu0 0.0
        %970 = vmatprep.subr.mxu0 0.0
        %971 = vmatpush1.msra.mxu0 0.0
        %972 = vmatprep.subr.mxu0 0.0
        %973 = vmatpush1.msra.mxu0 0.0
        %974 = vmatprep.subr.mxu0 0.0
        %975 = vmatpush1.msra.mxu0 0.0
        %976 = vmatprep.subr.mxu0 0.0
        %977 = vmatpush1.msra.mxu0 0.0
        %978 = vmatprep.subr.mxu0 0.0
        %979 = vmatpush1.msra.mxu0 0.0
        %980 = vmatprep.subr.mxu0 0.0
        %981 = vmatpush1.msra.mxu0 0.0
        %982 = vmatprep.subr.mxu0 0.0
        %983 = vmatpush1.msra.mxu0 0.0
        %984 = vmatprep.subr.mxu0 0.0
        %985 = vmatpush1.msra.mxu0 0.0
        %986 = vmatprep.subr.mxu0 0.0
        %987 = vmatpush1.msra.mxu0 0.0
        %988 = vmatprep.subr.mxu0 0.0
        %989 = vmatpush1.msra.mxu0 0.0
        %990 = vmatprep.subr.mxu0 0.0
        %991 = vmatpush1.msra.mxu0 0.0
        %992 = vmatprep.subr.mxu0 0.0
        %993 = vmatpush1.msra.mxu0 0.0
        %994 = vmatprep.subr.mxu0 0.0
        %995 = vmatpush1.msra.mxu0 0.0
        %996 = vmatprep.subr.mxu0 0.0
        %997 = vmatpush1.msra.mxu0 0.0
        %998 = vmatprep.subr.mxu0 0.0
        %999 = vmatpush1.msra.mxu0 0.0
        %1000 = vmatprep.subr.mxu0 0.0
        %1001 = vmatpush1.msra.mxu0 0.0
        %1002 = vmatprep.subr.mxu0 0.0
        %1003 = vmatpush1.msra.mxu0 0.0
        %1004 = vmatprep.subr.mxu0 0.0
        %1005 = vmatpush1.msra.mxu0 0.0
        %1006 = vmatprep.subr.mxu0 0.0
        %1007 = vmatpush1.msra.mxu0 0.0
        %1008 = vmatprep.subr.mxu0 0.0
        %1009 = vmatpush1.msra.mxu0 0.0
        %1010 = vmatprep.subr.mxu0 0.0
        %1011 = vmatpush1.msra.mxu0 0.0
        %1012 = vmatprep.subr.mxu0 0.0
        %1013 = vmatpush1.msra.mxu0 0.0
        %1014 = vmatprep.subr.mxu0 0.0
        %1015 = vmatpush1.msra.mxu0 0.0
        %1016 = vmatprep.subr.mxu0 0.0
        %1017 = vmatpush1.msra.mxu0 0.0
        %1018 = vmatprep.subr.mxu0 0.0
        %1019 = vmatpush1.msra.mxu0 0.0
        %1020 = vmatprep.subr.mxu0 0.0
        %1021 = vmatpush1.msra.mxu0 0.0
        %1022 = vmatprep.subr.mxu0 0.0
        %1023 = vmatpush1.msra.mxu0 0.0
        %1024 = vmatprep.subr.mxu0 0.0
        %1025 = vmatpush1.msra.mxu0 0.0
        %1026 = vmatprep.mubr.f32.mxu0 0.0
        %1027 = vmatmul.mubr.f32.gmra.mrb[0].mxu0 %v960
        %v1028 = vpop.f32.mrb[0].mxu0
        %v1029 = vadd.f32 0.0, %v1028
        %v1030 = vpop.f32.mrb[0].mxu0
        %1031 = vdwg.mxu0
        %v1032 = vld [vmem:[%s527] sm:$0xff]
        %v1034 = vsel %vm871, %v1029, 0
        %1036 = vmatprep.subr.mxu0 0.0
        %1037 = vmatpush1.msra.mxu0 %v1032
        %1038 = vmatprep.subr.mxu0 0.0
        %1039 = vmatpush1.msra.mxu0 0.0
        %1040 = vmatprep.subr.mxu0 0.0
        %1041 = vmatpush1.msra.mxu0 0.0
        %1042 = vmatprep.subr.mxu0 0.0
        %1043 = vmatpush1.msra.mxu0 0.0
        %1044 = vmatprep.subr.mxu0 0.0
        %1045 = vmatpush1.msra.mxu0 0.0
        %1046 = vmatprep.subr.mxu0 0.0
        %1047 = vmatpush1.msra.mxu0 0.0
        %1048 = vmatprep.subr.mxu0 0.0
        %1049 = vmatpush1.msra.mxu0 0.0
        %1050 = vmatprep.subr.mxu0 0.0
        %1051 = vmatpush1.msra.mxu0 0.0
        %1052 = vmatprep.subr.mxu0 0.0
        %1053 = vmatpush1.msra.mxu0 0.0
        %1054 = vmatprep.subr.mxu0 0.0
        %1055 = vmatpush1.msra.mxu0 0.0
        %1056 = vmatprep.subr.mxu0 0.0
        %1057 = vmatpush1.msra.mxu0 0.0
        %1058 = vmatprep.subr.mxu0 0.0
        %1059 = vmatpush1.msra.mxu0 0.0
        %1060 = vmatprep.subr.mxu0 0.0
        %1061 = vmatpush1.msra.mxu0 0.0
        %1062 = vmatprep.subr.mxu0 0.0
        %1063 = vmatpush1.msra.mxu0 0.0
        %1064 = vmatprep.subr.mxu0 0.0
        %1065 = vmatpush1.msra.mxu0 0.0
        %1066 = vmatprep.subr.mxu0 0.0
        %1067 = vmatpush1.msra.mxu0 0.0
        %1068 = vmatprep.subr.mxu0 0.0
        %1069 = vmatpush1.msra.mxu0 0.0
        %1070 = vmatprep.subr.mxu0 0.0
        %1071 = vmatpush1.msra.mxu0 0.0
        %1072 = vmatprep.subr.mxu0 0.0
        %1073 = vmatpush1.msra.mxu0 0.0
        %1074 = vmatprep.subr.mxu0 0.0
        %1075 = vmatpush1.msra.mxu0 0.0
        %1076 = vmatprep.subr.mxu0 0.0
        %1077 = vmatpush1.msra.mxu0 0.0
        %1078 = vmatprep.subr.mxu0 0.0
        %1079 = vmatpush1.msra.mxu0 0.0
        %1080 = vmatprep.subr.mxu0 0.0
        %1081 = vmatpush1.msra.mxu0 0.0
        %1082 = vmatprep.subr.mxu0 0.0
        %1083 = vmatpush1.msra.mxu0 0.0
        %1084 = vmatprep.subr.mxu0 0.0
        %1085 = vmatpush1.msra.mxu0 0.0
        %1086 = vmatprep.subr.mxu0 0.0
        %1087 = vmatpush1.msra.mxu0 0.0
        %1088 = vmatprep.subr.mxu0 0.0
        %1089 = vmatpush1.msra.mxu0 0.0
        %1090 = vmatprep.subr.mxu0 0.0
        %1091 = vmatpush1.msra.mxu0 0.0
        %1092 = vmatprep.subr.mxu0 0.0
        %1093 = vmatpush1.msra.mxu0 0.0
        %1094 = vmatprep.subr.mxu0 0.0
        %1095 = vmatpush1.msra.mxu0 0.0
        %1096 = vmatprep.subr.mxu0 0.0
        %1097 = vmatpush1.msra.mxu0 0.0
        %1098 = vmatprep.subr.mxu0 0.0
        %1099 = vmatpush1.msra.mxu0 0.0
        %1100 = vmatprep.mubr.f32.mxu0 0.0
        %1101 = vmatmul.mubr.f32.gmra.mrb[0].mxu0 %v1034
        %v1102 = vpop.f32.mrb[0].mxu0
        %v1103 = vadd.f32 0.0, %v1102
        %v1104 = vpop.f32.mrb[0].mxu0
        %1105 = vdwg.mxu0
        %p1106 = scmp.eq.s32.totalorder %s43, 0
        // Predicated region
        $region93: #{tpu_custom_call.1} parent=55 // pred_check
          %p1107 = pneg %p1106
        $region94: #{tpu_custom_call.1} parent=55 // pred_check_branch
          %1109 = sbr.rel (%p1107) target = $region96
        $region95: #{tpu_custom_call.1} parent=55 // pred_region
          %1110 = vst.msk [vmem:[#allocation2] sm:$0xff] %vm634, 0.0
        $region96: #{tpu_custom_call.1} parent=55 // pred_fallthru
          _
        %v1111 = vld [vmem:[#allocation2] sm:$0xff]
        %v1112 = vadd.f32 %v1111, %v1103
        %1113 = vst.msk [vmem:[#allocation2] sm:$0xff] %vm634, %v1112
        %p1114 = scmp.eq.s32.totalorder %s43, 3
        // Predicated region
        $region97: #{tpu_custom_call.1} parent=55 // pred_check
          %p1115 = pneg %p1114
        $region98: #{tpu_custom_call.1} parent=55 // pred_check_branch
          %1117 = sbr.rel (%p1115) target = $region100
        $region99: #{tpu_custom_call.1} parent=55 // pred_region
          %v1118 = vld [vmem:[#allocation2] sm:$0xff]
          %v1119 = vld [vmem:[#allocation17] sm:$0x1]
          %v1121 = vlaneseq
          %v1122 = vshrl.u32 %v1121, 7
          %v1123 = vsub.s32 0, %v1122
          %v1124 = vrot.slane %v1119, %v1123
          %v1126 = vadd.f32 %v1118, %v1124
          %1127 = vst.msk [vmem:[%s621] sm:$0xff] %vm634, %v1126
        $region100: #{tpu_custom_call.1} parent=55 // pred_fallthru
          _
        %s1128 = sand.u32 %s287, 1
        %s1129 = scalar_lea.sflag [#allocation5], %s1128
        %s1130 = sand.u32 %s287, 1
        %s1131 = smul.addr %s1130, 8
        %s1132 = scalar_lea.vmem [#allocation18], %s1131
        // Predicated region
        $region101: #{tpu_custom_call.1} parent=55 // pred_check
          %p1133 = pneg %p297
        $region102: #{tpu_custom_call.1} parent=55 // pred_check_branch
          %1135 = sbr.rel (%p1133) target = $region104
        $region103: #{tpu_custom_call.1} parent=55 // pred_region
          %s1137 = ssub.s32 128, 128
          %1138 = vsyncadd %s1129, %s1137
          %s1139 = smul.addr %s42, 128
          %s1140 = scalar_lea.hbm %s9, %s1139
          %s1142 = sshll.u32 %s1132, 4
          %s1143 = int_to_ptr.vmem [resolvable:$true] %s1142
          %1145 = dma.vmem_to_hbm [thread:$0]  %s1143, 128, %s1140, %s1129
        $region104: #{tpu_custom_call.1} parent=55 // pred_fallthru
          _
      $region56: #{tpu_custom_call.1} parent=5 // pred_fallthru
        _
      %p1146 = scmp.le.s32.totalorder 2, %s33
      // Predicated region
      $region105: #{tpu_custom_call.1} parent=5 // pred_check
        %p1147 = pneg %p1146
      $region106: #{tpu_custom_call.1} parent=5 // pred_check_branch
        %1149 = sbr.rel (%p1147) target = $region108
      $region107: #{tpu_custom_call.1} parent=5 // pred_region
        %s1150 = ssub.s32 %s33, 2
        // Predicated region
        $region109: #{tpu_custom_call.1} parent=107 // pred_check
          %p1151 = pneg %p303
        $region110: #{tpu_custom_call.1} parent=107 // pred_check_branch
          %1153 = sbr.rel (%p1151) target = $region112
        $region111: #{tpu_custom_call.1} parent=107 // pred_region
          %s1154 = sand.u32 %s288, 1
          %s1155 = scalar_lea.sflag [#allocation5], %s1154
          %s1156 = sand.u32 %s288, 1
          %s1157 = smul.addr %s1156, 8
          %s1158 = scalar_lea.vmem [#allocation18], %s1157
          %1159 = dma.done %s1155, 128
        $region112: #{tpu_custom_call.1} parent=107 // pred_fallthru
          _
      $region108: #{tpu_custom_call.1} parent=5 // pred_fallthru
        _
    $region6: #{tpu_custom_call.1} parent=1 // loop_footer
      %s37 = sadd.s32 1, %s33
    $region7: #{tpu_custom_call.1} parent=1 // loop_footer_branch
      %32 = sbr.rel target = $region3
    $region8: #{tpu_custom_call.1} parent=1 // loop_exit
      _
    %1160 = vsyncpa [#allocation4], 1
    %s1161 = scalar_lea.sflag [#allocation4], 1
    %1162 = vsyncpa %s1161, 1
    %1163 = vsyncpa [#allocation7], 1
    %s1164 = scalar_lea.sflag [#allocation7], 1
    %1165 = vsyncpa %s1164, 1
    %1166 = vsyncpa [#allocation10], 1
    %s1167 = scalar_lea.sflag [#allocation10], 1
    %1168 = vsyncpa %s1167, 1
    %1169 = vsyncpa [#allocation13], 1
    %s1170 = scalar_lea.sflag [#allocation13], 1
    %1171 = vsyncpa %s1170, 1
    %1172 = vsyncpa [#allocation16], 1
    %s1173 = scalar_lea.sflag [#allocation16], 1
    %1174 = vsyncpa %s1173, 1
    %1175 = vsyncpa [#allocation5], 1
    %s1176 = scalar_lea.sflag [#allocation5], 1
    %1177 = vsyncpa %s1176, 1

</llo_original>
